<compile_context>
chip_gen: v5e
topology: v5e:2x2
jax: 0.10.0
libtpu: 0.0.40
codegen_flags: <defaults>
</compile_context>

<pallas_src>
import jax
import jax.numpy as jnp
from jax.experimental import pallas as pl
from jax.experimental.pallas import tpu as pltpu


_INV_SQRT2 = 0.7071067811865476


def _erf_approx(z):
    # Abramowitz & Stegun 7.1.26, |abs err| < 1.5e-7.  exp and the reciprocal
    # seed run on the EUP slot; everything else is VPU mul/add/select, so it
    # lowers on v5e/v6e/v7x.
    a1, a2, a3, a4, a5 = (0.254829592, -0.284496736, 1.421413741,
                          -1.453152027, 1.061405429)
    p = 0.3275911
    za = jnp.abs(z)
    d = 1.0 + p * za
    r = pl.reciprocal(d, approx=True)      # EUP slot (off the VALU path)
    t = r * (2.0 - d * r)                  # one Newton step -> ~f32 accuracy
    poly = ((((a5 * t + a4) * t + a3) * t + a2) * t + a1) * t
    e = 1.0 - poly * jnp.exp(-za * za)
    return jnp.where(z >= 0, e, -e)


def _gelu_exact(h):
    # Matches torch.nn.functional.gelu default (erf-based, not tanh approx).
    return 0.5 * h * (1.0 + _erf_approx(h * _INV_SQRT2))


def _mlp_kernel(x_ref, w_fc_ref, b_fc_ref, w_proj_ref, b_proj_ref, o_ref,
                acc_ref):
    # Grid: (row tiles [parallel], hidden tiles [arbitrary / reduction]).
    # The output block index is constant across axis 1, so it stays resident
    # and is only written on the final hidden tile.
    j = pl.program_id(1)

    @pl.when(j == 0)
    def _init():
        acc_ref[...] = jnp.zeros_like(acc_ref)

    x = x_ref[...]                                               # (tm, C)
    # c_fc slice for this hidden tile: (tm, C) @ (C, tk) on the MXU, f32 acc.
    h = jnp.dot(x, w_fc_ref[...],
                preferred_element_type=jnp.float32) + b_fc_ref[0]
    h = _gelu_exact(h)
    # Partial c_proj product; cast back to the input dtype so bf16 inputs get
    # bf16 MXU throughput while accumulation stays f32.
    acc_ref[...] += jnp.dot(h.astype(x.dtype), w_proj_ref[...],
                            preferred_element_type=jnp.float32)

    @pl.when(j == pl.num_programs(1) - 1)
    def _finalize():
        # TODO(synk): nn.Dropout skipped (eval mode / p = 0 -> identity).
        o_ref[...] = (acc_ref[...] + b_proj_ref[0]).astype(o_ref.dtype)


def _round_up(x, m):
    return ((x + m - 1) // m) * m


def _estimate_vmem_bytes(tm, tk, c, x_bytes, w_bytes):
    """Rough per-call VMEM footprint (bytes) for a (tm, tk) tile plan."""
    est = 0
    est += 2 * 2 * tm * c * x_bytes       # x + out tiles, double-buffered
    est += 2 * c * tk * w_bytes           # W_fc tile, double-buffered
    est += 2 * tk * c * w_bytes           # W_proj tile, double-buffered
    est += 2 * (tk + c) * w_bytes         # biases
    est += tm * c * 4                     # f32 accumulator scratch
    est += 3 * tm * tk * 4                # h + GELU elementwise temporaries
    return est


def _choose_tiles(rows, c, h_dim, x_bytes, w_bytes, block_m, vmem_budget):
    # Row tile: MXU-aligned.  Prefer multiples of 256 (v6e/v7x 2x256^2 MXU),
    # fall back to 128 / 16 / 8 for small row counts (rows are zero-padded up
    # to one tile).
    if rows >= 256:
        tm = max(256, min(_round_up(block_m, 256), (rows // 256) * 256))
    elif rows >= 128:
        tm = 128
    else:
        tm = _round_up(rows, 16 if x_bytes < 4 else 8)

    # Hidden tile: prefer tk == H so both weight matrices have a constant block
    # index (DMA'd once, VMEM-resident for the whole kernel); otherwise the
    # largest multiple of 256 dividing H that fits the VMEM budget (floor 256
    # keeps the c_proj contraction dim MXU-friendly).
    tk_candidates = [h_dim] + [t for t in (2048, 1024, 512, 256)
                               if t < h_dim and h_dim % t == 0]
    while True:
        for tk in tk_candidates:
            if _estimate_vmem_bytes(tm, tk, c, x_bytes, w_bytes) <= vmem_budget:
                # Keep >= 2 row tiles when possible so the 'parallel' axis can
                # shard across v7x's two TensorCores.
                if tm >= 256 and rows <= tm:
                    tm = max(128, tm // 2)
                return tm, tk
        if tm > 256:
            tm = max(256, tm // 2)
        elif tm > 128:
            tm = 128
        else:
            return tm, tk_candidates[-1]


def mlp_forward(x, w_fc, b_fc, w_proj, b_proj, *, block_m=512,
                vmem_budget_bytes=40 * 1024 * 1024):
    """GPT-2 MLP forward: gelu(x @ w_fc + b_fc) @ w_proj + b_proj.

    x:      (B, T, C)
    w_fc:   (C, H) with H = 4*C   ((in, out) layout, transposed vs torch)
    b_fc:   (H,)
    w_proj: (H, C)
    b_proj: (C,)

    For v6e/v7x, pass bf16 x / weights at the call site: matmuls run at native
    bf16 MXU throughput while accumulation stays f32 inside the kernel.
    """
    B, T, C = x.shape
    H = w_fc.shape[1]
    assert w_fc.shape == (C, H)
    assert b_fc.shape == (H,)
    assert w_proj.shape == (H, C)
    assert b_proj.shape == (C,)

    rows = B * T
    x2 = x.reshape(rows, C)
    b_fc2 = b_fc.reshape(1, H)
    b_proj2 = b_proj.reshape(1, C)

    x_bytes = x.dtype.itemsize
    w_bytes = w_fc.dtype.itemsize
    tm, tk = _choose_tiles(rows, C, H, x_bytes, w_bytes, block_m,
                           vmem_budget_bytes)

    # Pad the row axis to a tile multiple (padded rows compute throwaway
    # values that are sliced off) instead of falling back to a whole-array
    # block, which was a latent VMEM-OOM hazard.
    padded_rows = _round_up(rows, tm)
    if padded_rows != rows:
        x2 = jnp.pad(x2, ((0, padded_rows - rows), (0, 0)))

    grid = (padded_rows // tm, H // tk)

    est = _estimate_vmem_bytes(tm, tk, C, x_bytes, w_bytes)
    # Raise the scoped-VMEM ceiling (defaults: 16 MiB v5e / 32 MiB v6e, v7x);
    # cap at 64 MiB so the plan also stays inside v7x's physical VMEM.
    vmem_limit = int(min(64 * 1024 * 1024, max(32 * 1024 * 1024, est * 3 // 2)))

    out2 = pl.pallas_call(
        _mlp_kernel,
        out_shape=jax.ShapeDtypeStruct((padded_rows, C), x.dtype),
        grid_spec=pltpu.PrefetchScalarGridSpec(
            num_scalar_prefetch=0,
            grid=grid,
            in_specs=[
                pl.BlockSpec((tm, C), lambda i, j: (i, 0)),   # x rows
                pl.BlockSpec((C, tk), lambda i, j: (0, j)),   # c_fc weight
                pl.BlockSpec((1, tk), lambda i, j: (0, j)),   # c_fc bias
                pl.BlockSpec((tk, C), lambda i, j: (j, 0)),   # c_proj weight
                pl.BlockSpec((1, C), lambda i, j: (0, 0)),    # c_proj bias
            ],
            out_specs=pl.BlockSpec((tm, C), lambda i, j: (i, 0)),
            scratch_shapes=[pltpu.VMEM((tm, C), jnp.float32)],
        ),
        compiler_params=pltpu.CompilerParams(
            dimension_semantics=("parallel", "arbitrary"),
            vmem_limit_bytes=vmem_limit),
    )(x2, w_fc, b_fc2, w_proj, b_proj2)

    if padded_rows != rows:
        out2 = out2[:rows]
    return out2.reshape(B, T, C)


def _reference(x, w_fc, b_fc, w_proj, b_proj):
    # Pure-JAX mirror of the PyTorch forward (eval mode).
    h = x @ w_fc + b_fc
    h = jax.nn.gelu(h, approximate=False)   # exact erf GELU == F.gelu default
    return h @ w_proj + b_proj              # dropout: identity in eval mode


if __name__ == "__main__":
    # Small GPT-2-ish config: B=2, T=16, n_embd=64 -> hidden H=256.
    B, T, C = 2, 16, 64
    H = 4 * C

    key = jax.random.PRNGKey(0)
    kx, k1, k2, k3, k4 = jax.random.split(key, 5)
    x = jax.random.normal(kx, (B, T, C), dtype=jnp.float32)
    # Deterministic params, stored (in, out) so the kernel does x @ W + b.
    w_fc = jax.random.normal(k1, (C, H), dtype=jnp.float32) * 0.02
    b_fc = jax.random.normal(k2, (H,), dtype=jnp.float32) * 0.02
    w_proj = jax.random.normal(k3, (H, C), dtype=jnp.float32) * 0.02
    b_proj = jax.random.normal(k4, (C,), dtype=jnp.float32) * 0.02

    out = mlp_forward(x, w_fc, b_fc, w_proj, b_proj)
    out = jax.block_until_ready(out)

    ref = _reference(x, w_fc, b_fc, w_proj, b_proj)
    assert out.shape == (B, T, C)
    # A&S erf (|err| < 1.5e-7) + Newton-refined approx reciprocal keep the
    # kernel within f32-level tolerance of jax.nn.gelu's exact-erf reference.
    assert jnp.allclose(out, ref, atol=5e-5, rtol=5e-5), "mismatch vs reference"

    print("KERNEL_OK")
</pallas_src>

<mosaic_0001>
module attributes {stable_mosaic.version = 11 : i64} {
  func.func @_mlp_kernel(%arg0: i32, %arg1: i32, %arg2: memref<32x64xf32, #tpu.memory_space<vmem>>, %arg3: memref<64x256xf32, #tpu.memory_space<vmem>>, %arg4: memref<1x256xf32, #tpu.memory_space<vmem>>, %arg5: memref<256x64xf32, #tpu.memory_space<vmem>>, %arg6: memref<1x64xf32, #tpu.memory_space<vmem>>, %arg7: memref<32x64xf32, #tpu.memory_space<vmem>>, %arg8: memref<32x64xf32, #tpu.memory_space<vmem>>) attributes {dimension_semantics = [#tpu.dimension_semantics<parallel>, #tpu.dimension_semantics<arbitrary>], iteration_bounds = array<i64: 1, 1>, scalar_prefetch = 0 : i64, scratch_operands = 1 : i64, tpu.core_type = #tpu.core_type<tc>, window_params = [{transform_indices = @transform_0, window_bounds = array<i64: 32, 64>}, {transform_indices = @transform_1, window_bounds = array<i64: 64, 256>}, {transform_indices = @transform_2, window_bounds = array<i64: 1, 256>}, {transform_indices = @transform_3, window_bounds = array<i64: 256, 64>}, {pipeline_mode = #tpu.pipeline_mode<synchronous>, transform_indices = @transform_4, window_bounds = array<i64: 1, 64>}, {transform_indices = @transform_5, window_bounds = array<i64: 32, 64>}]} {
    %c0_i32 = arith.constant 0 : i32
    %0 = arith.cmpi eq, %arg1, %c0_i32 : i32
    %1 = arith.extui %0 : i1 to i32
    %c0_i32_0 = arith.constant 0 : i32
    %2 = arith.cmpi ne, %1, %c0_i32_0 : i32
    scf.if %2 {
      %cst_30 = arith.constant 0.000000e+00 : f32
      %62 = vector.broadcast %cst_30 : f32 to vector<32x64xf32>
      %c0_31 = arith.constant 0 : index
      %c0_32 = arith.constant 0 : index
      %63 = vector.load %arg8[%c0_31, %c0_32] : memref<32x64xf32, #tpu.memory_space<vmem>>, vector<32x64xf32>
      tpu.vector_store %arg8[%c0_31, %c0_32], %62 {strides = array<i32>} : memref<32x64xf32, #tpu.memory_space<vmem>>, vector<32x64xf32>,
    } else {
    }
    %c0 = arith.constant 0 : index
    %c0_1 = arith.constant 0 : index
    %3 = vector.load %arg2[%c0, %c0_1] : memref<32x64xf32, #tpu.memory_space<vmem>>, vector<32x64xf32>
    %c0_2 = arith.constant 0 : index
    %c0_3 = arith.constant 0 : index
    %4 = vector.load %arg3[%c0_2, %c0_3] : memref<64x256xf32, #tpu.memory_space<vmem>>, vector<64x256xf32>
    %cst = arith.constant dense<0.000000e+00> : vector<32x256xf32>
    %5 = tpu.matmul %3, %4, %cst {dimension_numbers = #tpu.dot_dimension_numbers<[1], [0], [0], [1], [0, 0, 1, 1], [], []>} : vector<32x64xf32>, vector<64x256xf32>, vector<32x256xf32> -> vector<32x256xf32>
    %c0_4 = arith.constant 0 : index
    %c0_5 = arith.constant 0 : index
    %6 = vector.load %arg4[%c0_4, %c0_5] : memref<1x256xf32, #tpu.memory_space<vmem>>, vector<1x256xf32>
    %7 = vector.shape_cast %6 : vector<1x256xf32> to vector<256xf32>
    %8 = vector.shape_cast %7 : vector<256xf32> to vector<1x256xf32>
    %9 = vector.broadcast %8 : vector<1x256xf32> to vector<32x256xf32>
    %10 = arith.addf %5, %9 : vector<32x256xf32>
    %cst_6 = arith.constant 5.000000e-01 : f32
    %11 = vector.broadcast %cst_6 : f32 to vector<32x256xf32>
    %12 = arith.mulf %11, %10 : vector<32x256xf32>
    %cst_7 = arith.constant 0.707106769 : f32
    %13 = vector.broadcast %cst_7 : f32 to vector<32x256xf32>
    %14 = arith.mulf %10, %13 : vector<32x256xf32>
    %15 = math.absf %14 : vector<32x256xf32>
    %cst_8 = arith.constant 0.327591091 : f32
    %16 = vector.broadcast %cst_8 : f32 to vector<32x256xf32>
    %17 = arith.mulf %16, %15 : vector<32x256xf32>
    %cst_9 = arith.constant 1.000000e+00 : f32
    %18 = vector.broadcast %cst_9 : f32 to vector<32x256xf32>
    %19 = arith.addf %18, %17 : vector<32x256xf32>
    %20 = tpu.reciprocal %19 {approx = true} : vector<32x256xf32> -> vector<32x256xf32>
    %21 = arith.mulf %19, %20 : vector<32x256xf32>
    %cst_10 = arith.constant 2.000000e+00 : f32
    %22 = vector.broadcast %cst_10 : f32 to vector<32x256xf32>
    %23 = arith.subf %22, %21 : vector<32x256xf32>
    %24 = arith.mulf %20, %23 : vector<32x256xf32>
    %cst_11 = arith.constant 1.06140542 : f32
    %25 = vector.broadcast %cst_11 : f32 to vector<32x256xf32>
    %26 = arith.mulf %25, %24 : vector<32x256xf32>
    %cst_12 = arith.constant -1.45315206 : f32
    %27 = vector.broadcast %cst_12 : f32 to vector<32x256xf32>
    %28 = arith.addf %26, %27 : vector<32x256xf32>
    %29 = arith.mulf %28, %24 : vector<32x256xf32>
    %cst_13 = arith.constant 1.42141378 : f32
    %30 = vector.broadcast %cst_13 : f32 to vector<32x256xf32>
    %31 = arith.addf %29, %30 : vector<32x256xf32>
    %32 = arith.mulf %31, %24 : vector<32x256xf32>
    %cst_14 = arith.constant -0.284496725 : f32
    %33 = vector.broadcast %cst_14 : f32 to vector<32x256xf32>
    %34 = arith.addf %32, %33 : vector<32x256xf32>
    %35 = arith.mulf %34, %24 : vector<32x256xf32>
    %cst_15 = arith.constant 0.254829586 : f32
    %36 = vector.broadcast %cst_15 : f32 to vector<32x256xf32>
    %37 = arith.addf %35, %36 : vector<32x256xf32>
    %38 = arith.mulf %37, %24 : vector<32x256xf32>
    %cst_16 = arith.constant 0.000000e+00 : f32
    %39 = vector.broadcast %cst_16 : f32 to vector<32x256xf32>
    %40 = arith.subf %39, %15 : vector<32x256xf32>
    %41 = arith.mulf %40, %15 : vector<32x256xf32>
    %42 = math.exp %41 : vector<32x256xf32>
    %43 = arith.mulf %38, %42 : vector<32x256xf32>
    %cst_17 = arith.constant 1.000000e+00 : f32
    %44 = vector.broadcast %cst_17 : f32 to vector<32x256xf32>
    %45 = arith.subf %44, %43 : vector<32x256xf32>
    %cst_18 = arith.constant 0.000000e+00 : f32
    %46 = vector.broadcast %cst_18 : f32 to vector<32x256xf32>
    %47 = arith.cmpf oge, %14, %46 : vector<32x256xf32>
    %cst_19 = arith.constant 0.000000e+00 : f32
    %48 = vector.broadcast %cst_19 : f32 to vector<32x256xf32>
    %49 = arith.subf %48, %45 : vector<32x256xf32>
    %50 = arith.select %47, %45, %49 : vector<32x256xi1>, vector<32x256xf32>
    %cst_20 = arith.constant 1.000000e+00 : f32
    %51 = vector.broadcast %cst_20 : f32 to vector<32x256xf32>
    %52 = arith.addf %51, %50 : vector<32x256xf32>
    %53 = arith.mulf %12, %52 : vector<32x256xf32>
    %c0_21 = arith.constant 0 : index
    %c0_22 = arith.constant 0 : index
    %54 = vector.load %arg8[%c0_21, %c0_22] : memref<32x64xf32, #tpu.memory_space<vmem>>, vector<32x64xf32>
    %c0_23 = arith.constant 0 : index
    %c0_24 = arith.constant 0 : index
    %55 = vector.load %arg5[%c0_23, %c0_24] : memref<256x64xf32, #tpu.memory_space<vmem>>, vector<256x64xf32>
    %cst_25 = arith.constant dense<0.000000e+00> : vector<32x64xf32>
    %56 = tpu.matmul %53, %55, %cst_25 {dimension_numbers = #tpu.dot_dimension_numbers<[1], [0], [0], [1], [0, 0, 1, 1], [], []>} : vector<32x256xf32>, vector<256x64xf32>, vector<32x64xf32> -> vector<32x64xf32>
    %57 = arith.addf %54, %56 : vector<32x64xf32>
    %c0_26 = arith.constant 0 : index
    %c0_27 = arith.constant 0 : index
    %58 = vector.load %arg8[%c0_26, %c0_27] : memref<32x64xf32, #tpu.memory_space<vmem>>, vector<32x64xf32>
    tpu.vector_store %arg8[%c0_26, %c0_27], %57 {strides = array<i32>} : memref<32x64xf32, #tpu.memory_space<vmem>>, vector<32x64xf32>,
    %c0_i32_28 = arith.constant 0 : i32
    %59 = arith.cmpi eq, %arg1, %c0_i32_28 : i32
    %60 = arith.extui %59 : i1 to i32
    %c0_i32_29 = arith.constant 0 : i32
    %61 = arith.cmpi ne, %60, %c0_i32_29 : i32
    scf.if %61 {
      %c0_30 = arith.constant 0 : index
      %c0_31 = arith.constant 0 : index
      %62 = vector.load %arg8[%c0_30, %c0_31] : memref<32x64xf32, #tpu.memory_space<vmem>>, vector<32x64xf32>
      %c0_32 = arith.constant 0 : index
      %c0_33 = arith.constant 0 : index
      %63 = vector.load %arg6[%c0_32, %c0_33] : memref<1x64xf32, #tpu.memory_space<vmem>>, vector<1x64xf32>
      %64 = vector.shape_cast %63 : vector<1x64xf32> to vector<64xf32>
      %65 = vector.shape_cast %64 : vector<64xf32> to vector<1x64xf32>
      %66 = vector.broadcast %65 : vector<1x64xf32> to vector<32x64xf32>
      %67 = arith.addf %62, %66 : vector<32x64xf32>
      %c0_34 = arith.constant 0 : index
      %c0_35 = arith.constant 0 : index
      %68 = vector.load %arg7[%c0_34, %c0_35] : memref<32x64xf32, #tpu.memory_space<vmem>>, vector<32x64xf32>
      tpu.vector_store %arg7[%c0_34, %c0_35], %67 {strides = array<i32>} : memref<32x64xf32, #tpu.memory_space<vmem>>, vector<32x64xf32>,
    } else {
    }
    return
  }
  func.func @transform_0(%arg0: i32, %arg1: i32) -> (i32, i32) {
    %c0_i32 = arith.constant 0 : i32
    %c0_i32_0 = arith.constant 0 : i32
    return %arg0, %c0_i32 : i32, i32
  }
  func.func @transform_1(%arg0: i32, %arg1: i32) -> (i32, i32) {
    %c0_i32 = arith.constant 0 : i32
    %c0_i32_0 = arith.constant 0 : i32
    return %c0_i32, %arg1 : i32, i32
  }
  func.func @transform_2(%arg0: i32, %arg1: i32) -> (i32, i32) {
    %c0_i32 = arith.constant 0 : i32
    %c0_i32_0 = arith.constant 0 : i32
    return %c0_i32, %arg1 : i32, i32
  }
  func.func @transform_3(%arg0: i32, %arg1: i32) -> (i32, i32) {
    %c0_i32 = arith.constant 0 : i32
    %c0_i32_0 = arith.constant 0 : i32
    return %arg1, %c0_i32 : i32, i32
  }
  func.func @transform_4(%arg0: i32, %arg1: i32) -> (i32, i32) {
    %c0_i32 = arith.constant 0 : i32
    %c0_i32_0 = arith.constant 0 : i32
    %c0_i32_1 = arith.constant 0 : i32
    return %c0_i32, %c0_i32_0 : i32, i32
  }
  func.func @transform_5(%arg0: i32, %arg1: i32) -> (i32, i32) {
    %c0_i32 = arith.constant 0 : i32
    %c0_i32_0 = arith.constant 0 : i32
    return %arg0, %c0_i32 : i32, i32
  }
}

</mosaic_0001>

<llo_original>
// kernel: tpu_custom_call.1
$region0: #{tpu_custom_call.1}
  #allocation0 [shape = 'u32[]', space=smem, size = 0x4, offset = 0x4, fixed_abs, tag = 'smem constant byte address 0x4 - core index']
  #allocation1 [shape = 'u32[72,128]{1,0:T(1,128)}', space=vmem, size = 0x9000, scoped, tag = 'internal scratch']
  #allocation2 [shape = 'f32[32,64]{1,0:T(8,128)}', space=vmem, size = 0x4000, scoped, tag = 'scratch operand']
  %s0 = inlined_call_operand.vmem [shape: f32[32,64], index: 0, kind: input, shape index: {}]
  %s1 = inlined_call_operand.vmem [shape: f32[64,256], index: 1, kind: input, shape index: {}]
  %s2 = inlined_call_operand.vmem [shape: f32[1,256], index: 2, kind: input, shape index: {}]
  %s3 = inlined_call_operand.vmem [shape: f32[256,64], index: 3, kind: input, shape index: {}]
  %s4 = inlined_call_operand.vmem [shape: f32[1,64], index: 4, kind: input, shape index: {}]
  %s5 = inlined_call_operand.hbm [shape: f32[32,64], index: 5, kind: output, shape index: {}]
  %s6 = sld [smem:[#allocation0]]
  $region38: #{tpu_custom_call.1} parent=0
    _
  %s8 = ssub.s32 1, %s6
  %s9 = scalar_select 0, %s8, %s6
  $region1: #{tpu_custom_call.1} parent=0
    #allocation3 [shape = 'u8[16384]{0}', space=vmem, size = 0x4000, scoped, tag = 'output window, operand 0, single buffered']
    #allocation4 [shape = 's32[1]{0}', space=sflag, size = 0x4, scoped, tag = 'scoped memory for tpu_custom_call.1']
    %10 = vsyncpa [#allocation4], 0
    // Predicated region
    $region2: #{tpu_custom_call.1} parent=1 // pred_check
      _
    $region3: #{tpu_custom_call.1} parent=1 // pred_check_branch
      %12 = sbr.rel (0) target = $region5
    $region4: #{tpu_custom_call.1} parent=1 // pred_region
      _
    $region5: #{tpu_custom_call.1} parent=1 // pred_fallthru
      _
    // Predicated region
    $region6: #{tpu_custom_call.1} parent=1 // pred_check
      _
    $region7: #{tpu_custom_call.1} parent=1 // pred_check_branch
      %14 = sbr.rel (0) target = $region9
    $region8: #{tpu_custom_call.1} parent=1 // pred_region
      _
    $region9: #{tpu_custom_call.1} parent=1 // pred_fallthru
      _
    // Predicated region
    $region10: #{tpu_custom_call.1} parent=1 // pred_check
      _
    $region11: #{tpu_custom_call.1} parent=1 // pred_check_branch
      %16 = sbr.rel (0) target = $region13
    $region12: #{tpu_custom_call.1} parent=1 // pred_region
      _
    $region13: #{tpu_custom_call.1} parent=1 // pred_fallthru
      _
    // Predicated region
    $region14: #{tpu_custom_call.1} parent=1 // pred_check
      _
    $region15: #{tpu_custom_call.1} parent=1 // pred_check_branch
      %18 = sbr.rel (0) target = $region17
    $region16: #{tpu_custom_call.1} parent=1 // pred_region
      _
    $region17: #{tpu_custom_call.1} parent=1 // pred_fallthru
      _
    // Predicated region
    $region18: #{tpu_custom_call.1} parent=1 // pred_check
      _
    $region19: #{tpu_custom_call.1} parent=1 // pred_check_branch
      %20 = sbr.rel (0) target = $region21
    $region20: #{tpu_custom_call.1} parent=1 // pred_region
      _
    $region21: #{tpu_custom_call.1} parent=1 // pred_fallthru
      _
    %p21 = scmp.eq.s32.totalorder 0, 0
    // Predicated region
    $region22: #{tpu_custom_call.1} parent=1 // pred_check
      %p22 = pneg %p21
    $region23: #{tpu_custom_call.1} parent=1 // pred_check_branch
      %24 = sbr.rel (%p22) target = $region25
    $region24: #{tpu_custom_call.1} parent=1 // pred_region
      %vm25 = vcmask 523264
      %26 = vst.msk [vmem:[#allocation2] sm:$0xff] %vm25, 0.0
      %27 = vst.msk [vmem:[#allocation2 + $0x8] sm:$0xff] %vm25, 0.0
      %28 = vst.msk [vmem:[#allocation2 + $0x10] sm:$0xff] %vm25, 0.0
      %29 = vst.msk [vmem:[#allocation2 + $0x18] sm:$0xff] %vm25, 0.0
    $region25: #{tpu_custom_call.1} parent=1 // pred_fallthru
      _
    %v30 = vld [vmem:[%s0] sm:$0xff]
    %v31 = vld [vmem:[%s0 + $0x8] sm:$0xff]
    %v32 = vld [vmem:[%s0 + $0x10] sm:$0xff]
    %v33 = vld [vmem:[%s0 + $0x18] sm:$0xff]
    %v34 = vld [vmem:[%s1] sm:$0xff]
    %v35 = vld [vmem:[%s1 + $0x8] sm:$0xff]
    %v36 = vld [vmem:[%s1 + $0x10] sm:$0xff]
    %v37 = vld [vmem:[%s1 + $0x18] sm:$0xff]
    %v38 = vld [vmem:[%s1 + $0x20] sm:$0xff]
    %v39 = vld [vmem:[%s1 + $0x28] sm:$0xff]
    %v40 = vld [vmem:[%s1 + $0x30] sm:$0xff]
    %v41 = vld [vmem:[%s1 + $0x38] sm:$0xff]
    %v42 = vld [vmem:[%s1 + $0x40] sm:$0xff]
    %v43 = vld [vmem:[%s1 + $0x48] sm:$0xff]
    %v44 = vld [vmem:[%s1 + $0x50] sm:$0xff]
    %v45 = vld [vmem:[%s1 + $0x58] sm:$0xff]
    %v46 = vld [vmem:[%s1 + $0x60] sm:$0xff]
    %v47 = vld [vmem:[%s1 + $0x68] sm:$0xff]
    %v48 = vld [vmem:[%s1 + $0x70] sm:$0xff]
    %v49 = vld [vmem:[%s1 + $0x78] sm:$0xff]
    %v50 = vld [vmem:[%s2] sm:$0x3]
    %v52 = vperm.slane %v50, 0
    %v53 = vperm.slane %v50, 1
    %vm56 = vcmask 523264
    %v58 = vsel %vm56, %v30, 0
    %v61 = vsel %vm56, %v31, 0
    %v64 = vsel %vm56, %v32, 0
    %v67 = vsel %vm56, %v33, 0
    %69 = vmatpush.msra.mxu0 0.0
    %70 = vmatpush.msra.mxu0 0.0
    %71 = vmatpush.msra.mxu0 0.0
    %72 = vmatpush.msra.mxu0 0.0
    %73 = vmatpush.msra.mxu0 0.0
    %74 = vmatpush.msra.mxu0 0.0
    %75 = vmatpush.msra.mxu0 0.0
    %76 = vmatpush.msra.mxu0 0.0
    %77 = vmatpush.msra.mxu0 %v48
    %78 = vmatpush.msra.mxu0 %v46
    %79 = vmatpush.msra.mxu0 %v44
    %80 = vmatpush.msra.mxu0 %v42
    %81 = vmatpush.msra.mxu0 %v40
    %82 = vmatpush.msra.mxu0 %v38
    %83 = vmatpush.msra.mxu0 %v36
    %84 = vmatpush.msra.mxu0 %v34
    %85 = vmatmul.f32.gmra.mxu0 %v58
    %v86 = vpop.f32.mrf.mxu0
    %v87 = vadd.f32 %v52, %v86
    %88 = vmatmul.f32.gmra.mxu0 %v61
    %v89 = vpop.f32.mrf.mxu0
    %v90 = vadd.f32 %v52, %v89
    %91 = vmatmul.f32.gmra.mxu0 %v64
    %v92 = vpop.f32.mrf.mxu0
    %v93 = vadd.f32 %v52, %v92
    %94 = vmatmul.f32.gmra.mxu0 %v67
    %v95 = vpop.f32.mrf.mxu0
    %v96 = vadd.f32 %v52, %v95
    %97 = vdwg.mxu0
    %98 = vmatpush.msra.mxu0 0.0
    %99 = vmatpush.msra.mxu0 0.0
    %100 = vmatpush.msra.mxu0 0.0
    %101 = vmatpush.msra.mxu0 0.0
    %102 = vmatpush.msra.mxu0 0.0
    %103 = vmatpush.msra.mxu0 0.0
    %104 = vmatpush.msra.mxu0 0.0
    %105 = vmatpush.msra.mxu0 0.0
    %106 = vmatpush.msra.mxu0 %v49
    %107 = vmatpush.msra.mxu0 %v47
    %108 = vmatpush.msra.mxu0 %v45
    %109 = vmatpush.msra.mxu0 %v43
    %110 = vmatpush.msra.mxu0 %v41
    %111 = vmatpush.msra.mxu0 %v39
    %112 = vmatpush.msra.mxu0 %v37
    %113 = vmatpush.msra.mxu0 %v35
    %114 = vmatmul.f32.gmra.mxu0 %v58
    %v115 = vpop.f32.mrf.mxu0
    %v116 = vadd.f32 %v53, %v115
    %117 = vmatmul.f32.gmra.mxu0 %v61
    %v118 = vpop.f32.mrf.mxu0
    %v119 = vadd.f32 %v53, %v118
    %120 = vmatmul.f32.gmra.mxu0 %v64
    %v121 = vpop.f32.mrf.mxu0
    %v122 = vadd.f32 %v53, %v121
    %123 = vmatmul.f32.gmra.mxu0 %v67
    %v124 = vpop.f32.mrf.mxu0
    %v125 = vadd.f32 %v53, %v124
    %126 = vdwg.mxu0
    %v127 = vmul.f32 %v87, 0.5
    %v128 = vmul.f32 %v116, 0.5
    %v129 = vmul.f32 %v90, 0.5
    %v130 = vmul.f32 %v119, 0.5
    %v131 = vmul.f32 %v93, 0.5
    %v132 = vmul.f32 %v122, 0.5
    %v133 = vmul.f32 %v96, 0.5
    %v134 = vmul.f32 %v125, 0.5
    %v135 = vmul.f32 %v87, 0.70710677
    %v136 = vmul.f32 %v116, 0.70710677
    %v137 = vmul.f32 %v90, 0.70710677
    %v138 = vmul.f32 %v119, 0.70710677
    %v139 = vmul.f32 %v93, 0.70710677
    %v140 = vmul.f32 %v122, 0.70710677
    %v141 = vmul.f32 %v96, 0.70710677
    %v142 = vmul.f32 %v125, 0.70710677
    %v143 = vand.u32 2147483647, %v135
    %v144 = vand.u32 2147483647, %v136
    %v145 = vand.u32 2147483647, %v137
    %v146 = vand.u32 2147483647, %v138
    %v147 = vand.u32 2147483647, %v139
    %v148 = vand.u32 2147483647, %v140
    %v149 = vand.u32 2147483647, %v141
    %v150 = vand.u32 2147483647, %v142
    %v151 = vmul.f32 %v143, 0.3275911
    %v152 = vmul.f32 %v144, 0.3275911
    %v153 = vmul.f32 %v145, 0.3275911
    %v154 = vmul.f32 %v146, 0.3275911
    %v155 = vmul.f32 %v147, 0.3275911
    %v156 = vmul.f32 %v148, 0.3275911
    %v157 = vmul.f32 %v149, 0.3275911
    %v158 = vmul.f32 %v150, 0.3275911
    %v159 = vadd.f32 %v151, 1.0
    %v160 = vadd.f32 %v152, 1.0
    %v161 = vadd.f32 %v153, 1.0
    %v162 = vadd.f32 %v154, 1.0
    %v163 = vadd.f32 %v155, 1.0
    %v164 = vadd.f32 %v156, 1.0
    %v165 = vadd.f32 %v157, 1.0
    %v166 = vadd.f32 %v158, 1.0
    %v167 = vrcp.pop %v159
    %v168 = vrcp.pop %v160
    %v169 = vrcp.pop %v161
    %v170 = vrcp.pop %v162
    %v171 = vrcp.pop %v163
    %v172 = vrcp.pop %v164
    %v173 = vrcp.pop %v165
    %v174 = vrcp.pop %v166
    %v175 = vmul.f32 %v159, %v167
    %v176 = vmul.f32 %v160, %v168
    %v177 = vmul.f32 %v161, %v169
    %v178 = vmul.f32 %v162, %v170
    %v179 = vmul.f32 %v163, %v171
    %v180 = vmul.f32 %v164, %v172
    %v181 = vmul.f32 %v165, %v173
    %v182 = vmul.f32 %v166, %v174
    %v183 = vsub.f32 2.0, %v175
    %v184 = vsub.f32 2.0, %v176
    %v185 = vsub.f32 2.0, %v177
    %v186 = vsub.f32 2.0, %v178
    %v187 = vsub.f32 2.0, %v179
    %v188 = vsub.f32 2.0, %v180
    %v189 = vsub.f32 2.0, %v181
    %v190 = vsub.f32 2.0, %v182
    %v191 = vmul.f32 %v167, %v183
    %v192 = vmul.f32 %v168, %v184
    %v193 = vmul.f32 %v169, %v185
    %v194 = vmul.f32 %v170, %v186
    %v195 = vmul.f32 %v171, %v187
    %v196 = vmul.f32 %v172, %v188
    %v197 = vmul.f32 %v173, %v189
    %v198 = vmul.f32 %v174, %v190
    %v199 = vmul.f32 %v191, 1.0614054
    %v200 = vmul.f32 %v192, 1.0614054
    %v201 = vmul.f32 %v193, 1.0614054
    %v202 = vmul.f32 %v194, 1.0614054
    %v203 = vmul.f32 %v195, 1.0614054
    %v204 = vmul.f32 %v196, 1.0614054
    %v205 = vmul.f32 %v197, 1.0614054
    %v206 = vmul.f32 %v198, 1.0614054
    %v207 = vadd.f32 %v199, -1.4531521
    %v208 = vadd.f32 %v200, -1.4531521
    %v209 = vadd.f32 %v201, -1.4531521
    %v210 = vadd.f32 %v202, -1.4531521
    %v211 = vadd.f32 %v203, -1.4531521
    %v212 = vadd.f32 %v204, -1.4531521
    %v213 = vadd.f32 %v205, -1.4531521
    %v214 = vadd.f32 %v206, -1.4531521
    %v215 = vmul.f32 %v207, %v191
    %v216 = vmul.f32 %v208, %v192
    %v217 = vmul.f32 %v209, %v193
    %v218 = vmul.f32 %v210, %v194
    %v219 = vmul.f32 %v211, %v195
    %v220 = vmul.f32 %v212, %v196
    %v221 = vmul.f32 %v213, %v197
    %v222 = vmul.f32 %v214, %v198
    %v223 = vadd.f32 %v215, 1.4214138
    %v224 = vadd.f32 %v216, 1.4214138
    %v225 = vadd.f32 %v217, 1.4214138
    %v226 = vadd.f32 %v218, 1.4214138
    %v227 = vadd.f32 %v219, 1.4214138
    %v228 = vadd.f32 %v220, 1.4214138
    %v229 = vadd.f32 %v221, 1.4214138
    %v230 = vadd.f32 %v222, 1.4214138
    %v231 = vmul.f32 %v223, %v191
    %v232 = vmul.f32 %v224, %v192
    %v233 = vmul.f32 %v225, %v193
    %v234 = vmul.f32 %v226, %v194
    %v235 = vmul.f32 %v227, %v195
    %v236 = vmul.f32 %v228, %v196
    %v237 = vmul.f32 %v229, %v197
    %v238 = vmul.f32 %v230, %v198
    %v239 = vadd.f32 %v231, -0.28449672
    %v240 = vadd.f32 %v232, -0.28449672
    %v241 = vadd.f32 %v233, -0.28449672
    %v242 = vadd.f32 %v234, -0.28449672
    %v243 = vadd.f32 %v235, -0.28449672
    %v244 = vadd.f32 %v236, -0.28449672
    %v245 = vadd.f32 %v237, -0.28449672
    %v246 = vadd.f32 %v238, -0.28449672
    %v247 = vmul.f32 %v239, %v191
    %v248 = vmul.f32 %v240, %v192
    %v249 = vmul.f32 %v241, %v193
    %v250 = vmul.f32 %v242, %v194
    %v251 = vmul.f32 %v243, %v195
    %v252 = vmul.f32 %v244, %v196
    %v253 = vmul.f32 %v245, %v197
    %v254 = vmul.f32 %v246, %v198
    %v255 = vadd.f32 %v247, 0.2548296
    %v256 = vadd.f32 %v248, 0.2548296
    %v257 = vadd.f32 %v249, 0.2548296
    %v258 = vadd.f32 %v250, 0.2548296
    %v259 = vadd.f32 %v251, 0.2548296
    %v260 = vadd.f32 %v252, 0.2548296
    %v261 = vadd.f32 %v253, 0.2548296
    %v262 = vadd.f32 %v254, 0.2548296
    %v263 = vmul.f32 %v255, %v191
    %v264 = vmul.f32 %v256, %v192
    %v265 = vmul.f32 %v257, %v193
    %v266 = vmul.f32 %v258, %v194
    %v267 = vmul.f32 %v259, %v195
    %v268 = vmul.f32 %v260, %v196
    %v269 = vmul.f32 %v261, %v197
    %v270 = vmul.f32 %v262, %v198
    %v271 = vsub.f32 0.0, %v143
    %v272 = vsub.f32 0.0, %v144
    %v273 = vsub.f32 0.0, %v145
    %v274 = vsub.f32 0.0, %v146
    %v275 = vsub.f32 0.0, %v147
    %v276 = vsub.f32 0.0, %v148
    %v277 = vsub.f32 0.0, %v149
    %v278 = vsub.f32 0.0, %v150
    %v279 = vmul.f32 %v271, %v143
    %v280 = vmul.f32 %v272, %v144
    %v281 = vmul.f32 %v273, %v145
    %v282 = vmul.f32 %v274, %v146
    %v283 = vmul.f32 %v275, %v147
    %v284 = vmul.f32 %v276, %v148
    %v285 = vmul.f32 %v277, %v149
    %v286 = vmul.f32 %v278, %v150
    %v287 = vmul.f32 %v279, 1.442695
    %v288 = vpow.pop %v287
    %v289 = vmul.f32 %v280, 1.442695
    %v290 = vpow.pop %v289
    %v291 = vmul.f32 %v281, 1.442695
    %v292 = vpow.pop %v291
    %v293 = vmul.f32 %v282, 1.442695
    %v294 = vpow.pop %v293
    %v295 = vmul.f32 %v283, 1.442695
    %v296 = vpow.pop %v295
    %v297 = vmul.f32 %v284, 1.442695
    %v298 = vpow.pop %v297
    %v299 = vmul.f32 %v285, 1.442695
    %v300 = vpow.pop %v299
    %v301 = vmul.f32 %v286, 1.442695
    %v302 = vpow.pop %v301
    %v303 = vmul.f32 %v263, %v288
    %v304 = vmul.f32 %v264, %v290
    %v305 = vmul.f32 %v265, %v292
    %v306 = vmul.f32 %v266, %v294
    %v307 = vmul.f32 %v267, %v296
    %v308 = vmul.f32 %v268, %v298
    %v309 = vmul.f32 %v269, %v300
    %v310 = vmul.f32 %v270, %v302
    %v311 = vsub.f32 1.0, %v303
    %v312 = vsub.f32 1.0, %v304
    %v313 = vsub.f32 1.0, %v305
    %v314 = vsub.f32 1.0, %v306
    %v315 = vsub.f32 1.0, %v307
    %v316 = vsub.f32 1.0, %v308
    %v317 = vsub.f32 1.0, %v309
    %v318 = vsub.f32 1.0, %v310
    %vm319 = vcmp.ge.f32.partialorder %v135, 0.0
    %vm320 = vcmp.ge.f32.partialorder %v136, 0.0
    %vm321 = vcmp.ge.f32.partialorder %v137, 0.0
    %vm322 = vcmp.ge.f32.partialorder %v138, 0.0
    %vm323 = vcmp.ge.f32.partialorder %v139, 0.0
    %vm324 = vcmp.ge.f32.partialorder %v140, 0.0
    %vm325 = vcmp.ge.f32.partialorder %v141, 0.0
    %vm326 = vcmp.ge.f32.partialorder %v142, 0.0
    %v327 = vsub.f32 0.0, %v311
    %v328 = vsub.f32 0.0, %v312
    %v329 = vsub.f32 0.0, %v313
    %v330 = vsub.f32 0.0, %v314
    %v331 = vsub.f32 0.0, %v315
    %v332 = vsub.f32 0.0, %v316
    %v333 = vsub.f32 0.0, %v317
    %v334 = vsub.f32 0.0, %v318
    %v335 = vsel %vm319, %v311, %v327
    %v336 = vsel %vm320, %v312, %v328
    %v337 = vsel %vm321, %v313, %v329
    %v338 = vsel %vm322, %v314, %v330
    %v339 = vsel %vm323, %v315, %v331
    %v340 = vsel %vm324, %v316, %v332
    %v341 = vsel %vm325, %v317, %v333
    %v342 = vsel %vm326, %v318, %v334
    %v343 = vadd.f32 %v335, 1.0
    %v344 = vadd.f32 %v336, 1.0
    %v345 = vadd.f32 %v337, 1.0
    %v346 = vadd.f32 %v338, 1.0
    %v347 = vadd.f32 %v339, 1.0
    %v348 = vadd.f32 %v340, 1.0
    %v349 = vadd.f32 %v341, 1.0
    %v350 = vadd.f32 %v342, 1.0
    %v351 = vmul.f32 %v127, %v343
    %v352 = vmul.f32 %v128, %v344
    %v353 = vmul.f32 %v129, %v345
    %v354 = vmul.f32 %v130, %v346
    %v355 = vmul.f32 %v131, %v347
    %v356 = vmul.f32 %v132, %v348
    %v357 = vmul.f32 %v133, %v349
    %v358 = vmul.f32 %v134, %v350
    %v359 = vld [vmem:[#allocation2] sm:$0xff]
    %v360 = vld [vmem:[#allocation2 + $0x8] sm:$0xff]
    %v361 = vld [vmem:[#allocation2 + $0x10] sm:$0xff]
    %v362 = vld [vmem:[#allocation2 + $0x18] sm:$0xff]
    %v363 = vld [vmem:[%s3] sm:$0xff]
    %v364 = vld [vmem:[%s3 + $0x8] sm:$0xff]
    %v365 = vld [vmem:[%s3 + $0x10] sm:$0xff]
    %v366 = vld [vmem:[%s3 + $0x18] sm:$0xff]
    %v367 = vld [vmem:[%s3 + $0x20] sm:$0xff]
    %v368 = vld [vmem:[%s3 + $0x28] sm:$0xff]
    %v369 = vld [vmem:[%s3 + $0x30] sm:$0xff]
    %v370 = vld [vmem:[%s3 + $0x38] sm:$0xff]
    %v371 = vld [vmem:[%s3 + $0x40] sm:$0xff]
    %v372 = vld [vmem:[%s3 + $0x48] sm:$0xff]
    %v373 = vld [vmem:[%s3 + $0x50] sm:$0xff]
    %v374 = vld [vmem:[%s3 + $0x58] sm:$0xff]
    %v375 = vld [vmem:[%s3 + $0x60] sm:$0xff]
    %v376 = vld [vmem:[%s3 + $0x68] sm:$0xff]
    %v377 = vld [vmem:[%s3 + $0x70] sm:$0xff]
    %v378 = vld [vmem:[%s3 + $0x78] sm:$0xff]
    %v379 = vld [vmem:[%s3 + $0x80] sm:$0xff]
    %v380 = vld [vmem:[%s3 + $0x88] sm:$0xff]
    %v381 = vld [vmem:[%s3 + $0x90] sm:$0xff]
    %v382 = vld [vmem:[%s3 + $0x98] sm:$0xff]
    %v383 = vld [vmem:[%s3 + $0xa0] sm:$0xff]
    %v384 = vld [vmem:[%s3 + $0xa8] sm:$0xff]
    %v385 = vld [vmem:[%s3 + $0xb0] sm:$0xff]
    %v386 = vld [vmem:[%s3 + $0xb8] sm:$0xff]
    %v387 = vld [vmem:[%s3 + $0xc0] sm:$0xff]
    %v388 = vld [vmem:[%s3 + $0xc8] sm:$0xff]
    %v389 = vld [vmem:[%s3 + $0xd0] sm:$0xff]
    %v390 = vld [vmem:[%s3 + $0xd8] sm:$0xff]
    %v391 = vld [vmem:[%s3 + $0xe0] sm:$0xff]
    %v392 = vld [vmem:[%s3 + $0xe8] sm:$0xff]
    %v393 = vld [vmem:[%s3 + $0xf0] sm:$0xff]
    %v394 = vld [vmem:[%s3 + $0xf8] sm:$0xff]
    %395 = vmatpush.msra.mxu0 %v378
    %396 = vmatpush.msra.mxu0 %v377
    %397 = vmatpush.msra.mxu0 %v376
    %398 = vmatpush.msra.mxu0 %v375
    %399 = vmatpush.msra.mxu0 %v374
    %400 = vmatpush.msra.mxu0 %v373
    %401 = vmatpush.msra.mxu0 %v372
    %402 = vmatpush.msra.mxu0 %v371
    %403 = vmatpush.msra.mxu0 %v370
    %404 = vmatpush.msra.mxu0 %v369
    %405 = vmatpush.msra.mxu0 %v368
    %406 = vmatpush.msra.mxu0 %v367
    %407 = vmatpush.msra.mxu0 %v366
    %408 = vmatpush.msra.mxu0 %v365
    %409 = vmatpush.msra.mxu0 %v364
    %410 = vmatpush.msra.mxu0 %v363
    %411 = vmatmul.f32.gmra.mxu0 %v351
    %v412 = vpop.f32.mrf.mxu0
    %v413 = vadd.f32 0.0, %v412
    %414 = vmatmul.f32.gmra.mxu0 %v353
    %v415 = vpop.f32.mrf.mxu0
    %v416 = vadd.f32 0.0, %v415
    %417 = vmatmul.f32.gmra.mxu0 %v355
    %v418 = vpop.f32.mrf.mxu0
    %v419 = vadd.f32 0.0, %v418
    %420 = vmatmul.f32.gmra.mxu0 %v357
    %v421 = vpop.f32.mrf.mxu0
    %v422 = vadd.f32 0.0, %v421
    %423 = vdwg.mxu0
    %424 = vmatpush.msra.mxu0 %v394
    %425 = vmatpush.msra.mxu0 %v393
    %426 = vmatpush.msra.mxu0 %v392
    %427 = vmatpush.msra.mxu0 %v391
    %428 = vmatpush.msra.mxu0 %v390
    %429 = vmatpush.msra.mxu0 %v389
    %430 = vmatpush.msra.mxu0 %v388
    %431 = vmatpush.msra.mxu0 %v387
    %432 = vmatpush.msra.mxu0 %v386
    %433 = vmatpush.msra.mxu0 %v385
    %434 = vmatpush.msra.mxu0 %v384
    %435 = vmatpush.msra.mxu0 %v383
    %436 = vmatpush.msra.mxu0 %v382
    %437 = vmatpush.msra.mxu0 %v381
    %438 = vmatpush.msra.mxu0 %v380
    %439 = vmatpush.msra.mxu0 %v379
    %440 = vmatmul.f32.gmra.mxu0 %v352
    %v441 = vpop.f32.mrf.mxu0
    %v442 = vadd.f32 %v413, %v441
    %443 = vmatmul.f32.gmra.mxu0 %v354
    %v444 = vpop.f32.mrf.mxu0
    %v445 = vadd.f32 %v416, %v444
    %446 = vmatmul.f32.gmra.mxu0 %v356
    %v447 = vpop.f32.mrf.mxu0
    %v448 = vadd.f32 %v419, %v447
    %449 = vmatmul.f32.gmra.mxu0 %v358
    %v450 = vpop.f32.mrf.mxu0
    %v451 = vadd.f32 %v422, %v450
    %452 = vdwg.mxu0
    %v453 = vadd.f32 %v359, %v442
    %v454 = vadd.f32 %v360, %v445
    %v455 = vadd.f32 %v361, %v448
    %v456 = vadd.f32 %v362, %v451
    %457 = vst.msk [vmem:[#allocation2] sm:$0xff] %vm56, %v453
    %458 = vst.msk [vmem:[#allocation2 + $0x8] sm:$0xff] %vm56, %v454
    %459 = vst.msk [vmem:[#allocation2 + $0x10] sm:$0xff] %vm56, %v455
    %460 = vst.msk [vmem:[#allocation2 + $0x18] sm:$0xff] %vm56, %v456
    // Predicated region
    $region26: #{tpu_custom_call.1} parent=1 // pred_check
      %p461 = pneg %p21
    $region27: #{tpu_custom_call.1} parent=1 // pred_check_branch
      %463 = sbr.rel (%p461) target = $region29
    $region28: #{tpu_custom_call.1} parent=1 // pred_region
      %v464 = vld [vmem:[#allocation2] sm:$0xff]
      %v465 = vld [vmem:[#allocation2 + $0x8] sm:$0xff]
      %v466 = vld [vmem:[#allocation2 + $0x10] sm:$0xff]
      %v467 = vld [vmem:[#allocation2 + $0x18] sm:$0xff]
      %v468 = vld [vmem:[%s4] sm:$0x1]
      %v470 = vperm.slane %v468, 0
      %v472 = vadd.f32 %v464, %v470
      %v473 = vadd.f32 %v465, %v470
      %v474 = vadd.f32 %v466, %v470
      %v475 = vadd.f32 %v467, %v470
      %476 = vst.msk [vmem:[#allocation3] sm:$0xff] %vm56, %v472
      %477 = vst.msk [vmem:[#allocation3 + $0x8] sm:$0xff] %vm56, %v473
      %478 = vst.msk [vmem:[#allocation3 + $0x10] sm:$0xff] %vm56, %v474
      %479 = vst.msk [vmem:[#allocation3 + $0x18] sm:$0xff] %vm56, %v475
    $region29: #{tpu_custom_call.1} parent=1 // pred_fallthru
      _
    // Predicated region
    $region30: #{tpu_custom_call.1} parent=1 // pred_check
      _
    $region31: #{tpu_custom_call.1} parent=1 // pred_check_branch
      %481 = sbr.rel (0) target = $region33
    $region32: #{tpu_custom_call.1} parent=1 // pred_region
      %483 = vsyncadd [#allocation4], 0
      %s484 = sshll.u32 [#allocation3], 4
      %s485 = int_to_ptr.vmem [resolvable:$true] %s484
      %s486 = sshll.u32 %s5, 4
      %s487 = int_to_ptr.hbm [resolvable:$true] %s486
      %492 = dma.vmem_to_hbm [thread:$0]  %s485, 512, %s487, [#allocation4], 128, 128, 8
    $region33: #{tpu_custom_call.1} parent=1 // pred_fallthru
      _
    // Predicated region
    $region34: #{tpu_custom_call.1} parent=1 // pred_check
      _
    $region35: #{tpu_custom_call.1} parent=1 // pred_check_branch
      %494 = sbr.rel (0) target = $region37
    $region36: #{tpu_custom_call.1} parent=1 // pred_region
      %496 = dma.done [#allocation4], 512
    $region37: #{tpu_custom_call.1} parent=1 // pred_fallthru
      _
    %497 = vsyncpa [#allocation4], 1

</llo_original>
